<compile_context>
chip_gen: v6e
topology: v6e:2x2x1
jax: 0.10.0
libtpu: 0.0.40
codegen_flags: <defaults>
</compile_context>

<pallas_src>
import functools

import jax
import jax.numpy as jnp
from jax.experimental import pallas as pl
from jax.experimental.pallas import tpu as pltpu


def _rgbdiff_kernel(cur_ref, last_ref, out_ref, prev_ref, *, tb):
    """One grid step = `tb` consecutive output diffs of one (nb, rb, L) chunk.

    cur_ref : (nb, tb, rb, L)  frames [b*tb, (b+1)*tb) with b = NB-1-s (descending)
    last_ref: (nb, 1,  rb, L)  the globally-last frame (primes the carry)
    out_ref : (nb, tb, rb, L)  diffs  [b*tb, (b+1)*tb)
    prev_ref: (nb, rb, L)      carry: frame (b+1)*tb (first frame of the block
                               processed on the previous, temporally-later step)
    """
    s = pl.program_id(2)

    @pl.when(s == 0)
    def _():
        # Prime the carry with the globally-last frame for the last temporal block.
        prev_ref[...] = last_ref[...][:, 0]

    cur = cur_ref[...]                                       # (nb, tb, rb, L)
    if tb > 1:
        # In-block diffs: out[b*tb + j] = x[b*tb + j + 1] - x[b*tb + j]
        out_ref[:, : tb - 1] = cur[:, 1:] - cur[:, : tb - 1]
    # Boundary diff against the carried frame: out[(b+1)*tb - 1] = x[(b+1)*tb] - x[(b+1)*tb - 1]
    out_ref[:, tb - 1 : tb] = prev_ref[...][:, None] - cur[:, tb - 1 : tb]
    # Carry the first frame of this block for the next (temporally earlier) block.
    prev_ref[...] = cur[:, 0]


def _round_up(x, m):
    return ((x + m - 1) // m) * m


def _divisors(n):
    return [d for d in range(1, n + 1) if n % d == 0]


def _frame_layout(chw):
    """Pad C*H*W to a lane-dense length and factor it as (R, L), L % 128 == 0.

    Prefers full (8,128)-vreg packing (R % 8 == 0) and wide lanes so every
    store in the kernel is an unmasked vst. Returns (padded_len, R, L).
    """
    pad128 = _round_up(chw, 128)
    pad1024 = _round_up(chw, 1024)
    # Pay for full-vreg packing only if the extra padding is <= ~6%.
    chw_pad = pad1024 if (pad1024 - chw) * 16 <= chw else pad128

    best, best_score = None, None
    for lane in range(128, chw_pad + 1, 128):
        if chw_pad % lane:
            continue
        rows = chw_pad // lane
        score = (rows / _round_up(rows, 8), min(lane, 1024), -lane)
        if best_score is None or score > best_score:
            best_score, best = score, (rows, lane)
    rows, lane = best
    return chw_pad, rows, lane


def _tpu_budget():
    """Return (vmem_capacity_bytes, multi_tensorcore) — generation aware, conservative."""
    single_tc = False
    try:
        kind = jax.devices()[0].device_kind.lower()
        single_tc = any(t in kind for t in ("v5e", "v5 lite", "v5litepod", "v6e", "v6 lite"))
    except Exception:
        pass
    # v5e / v6e: 128 MiB, single TensorCore. v7x: 64 MiB per TC, 2 TCs. Unknown: be safe.
    vmem_cap = (128 << 20) if single_tc else (64 << 20)
    try:
        hw = int(getattr(pltpu.get_tpu_info(), "vmem_capacity_bytes", 0) or 0)
        if hw:
            vmem_cap = hw if single_tc else min(vmem_cap, hw)
    except Exception:
        pass
    return vmem_cap, not single_tc


def _plan_tiling(N, T, R, L, itemsize, vmem_cap, multi_tc):
    """Pick (nb, rb, tb): batch / row / temporal coarsening.

    Live VMEM ~= 2*in + 2*out block buffers + 2*primer + carry; target ~1/5 of
    (~80% VMEM - slack) per block, capped at 16 MiB (≈9 MiB on 64 MiB parts,
    16 MiB on 128 MiB parts, per the perf review).
    """
    safe = max(8 << 20, vmem_cap * 4 // 5 - (4 << 20))
    block_target = max(1 << 20, min(16 << 20, safe // 5))
    frame_bytes = R * L * itemsize

    def live_bytes(nb, tb, chunk):
        # 2 cur bufs + 2 out bufs (tb frames each) + 2 primer bufs + 1 carry.
        return (4 * tb + 3) * nb * chunk

    # Row chunk rb: split R only when a single frame-chunk can't fit the live
    # budget, or to feed the second TensorCore when N == 1 on a multi-TC part.
    rb_cands = [d for d in _divisors(R) if d == R or d % 8 == 0]
    rb = R
    if live_bytes(1, 1, frame_bytes) > safe:
        fitting = [d for d in rb_cands if live_bytes(1, 1, d * L * itemsize) <= safe]
        rb = max(fitting) if fitting else min(rb_cands)
    elif multi_tc and N == 1:
        splits = [d for d in rb_cands if R // d >= 2]
        if splits:
            rb = max(splits)
    chunk = rb * L * itemsize
    rc = R // rb

    # Batch chunk nb: biggest divisor of N that fits; keep >= 2 parallel chunks
    # on multi-TC parts (no such constraint on single-TC v5e/v6e).
    nb_cands = [d for d in _divisors(N)
                if d * chunk <= block_target and live_bytes(d, 1, chunk) <= safe] or [1]
    if multi_tc and N * rc >= 2:
        pref = [d for d in nb_cands if (N // d) * rc >= 2]
        nb_cands = pref or nb_cands
    nb = max(nb_cands)

    # Temporal coarsening tb: biggest divisor of T-1 filling the remaining budget.
    tb_cands = [d for d in _divisors(T - 1)
                if nb * d * chunk <= block_target and live_bytes(nb, d, chunk) <= safe] or [1]
    tb = max(tb_cands)
    return nb, rb, tb


def rgb_diff(image: jax.Array) -> jax.Array:
    """image: (N, T, C, H, W) -> (N, T-1, C, H, W), out[:, i] = x[:, i+1] - x[:, i]."""
    N, T, C, H, W = image.shape
    assert T >= 2, "need at least two frames to diff"
    # NOTE: like the PyTorch module, integer frames wrap on subtraction;
    # promote to float/signed at the call site if signed diffs are desired.
    chw = C * H * W
    chw_pad, R, L = _frame_layout(chw)
    itemsize = jnp.dtype(image.dtype).itemsize

    x = image.reshape(N, T, chw)
    if chw_pad != chw:
        # Lane-dense padding: a few % extra bytes (plus one un-pad slice after
        # the kernel) in exchange for unmasked full-lane stores everywhere.
        x = jnp.pad(x, ((0, 0), (0, 0), (0, chw_pad - chw)))
    x = x.reshape(N, T, R, L)

    vmem_cap, multi_tc = _tpu_budget()
    nb, rb, tb = _plan_tiling(N, T, R, L, itemsize, vmem_cap, multi_tc)
    nblk = (T - 1) // tb                      # temporal grid extent (descending blocks)
    grid = (N // nb, R // rb, nblk)

    blk = (nb, tb, rb, L)
    cur_spec = pl.BlockSpec(blk, lambda nc, rc, s: (nc, nblk - 1 - s, rc, 0))
    last_spec = pl.BlockSpec((nb, 1, rb, L), lambda nc, rc, s: (nc, T - 1, rc, 0))
    out_spec = pl.BlockSpec(blk, lambda nc, rc, s: (nc, nblk - 1 - s, rc, 0))

    chunk_bytes = nb * rb * L * itemsize
    live = (4 * tb + 3) * chunk_bytes
    vmem_limit = int(min(vmem_cap * 9 // 10, max(32 << 20, live + (8 << 20))))

    bytes_accessed = itemsize * chw_pad * (N * T + N * nblk + N * (T - 1))

    out = pl.pallas_call(
        functools.partial(_rgbdiff_kernel, tb=tb),
        out_shape=jax.ShapeDtypeStruct((N, T - 1, R, L), image.dtype),
        grid_spec=pltpu.PrefetchScalarGridSpec(
            num_scalar_prefetch=0,
            grid=grid,
            in_specs=[cur_spec, last_spec],
            out_specs=out_spec,
            scratch_shapes=[pltpu.VMEM((nb, rb, L), image.dtype)],
        ),
        compiler_params=pltpu.CompilerParams(
            dimension_semantics=("parallel", "parallel", "arbitrary"),
            vmem_limit_bytes=vmem_limit,
        ),
        cost_estimate=pl.CostEstimate(
            flops=N * (T - 1) * chw_pad,
            transcendentals=0,
            bytes_accessed=int(bytes_accessed),
        ),
    )(x, x)   # same array twice: full frame-block view + constant last-frame view

    out = out.reshape(N, T - 1, chw_pad)
    if chw_pad != chw:
        out = out[..., :chw]                  # un-pad (materializes a copy; odd C*H*W only)
    return out.reshape(N, T - 1, C, H, W)


if __name__ == "__main__":
    key = jax.random.PRNGKey(0)
    N, T, C, H, W = 2, 8, 4, 16, 16  # small shapes consistent with (N, T, C, H, W)
    image = jax.random.normal(key, (N, T, C, H, W), dtype=jnp.float32)

    out = rgb_diff(image)
    out = jax.block_until_ready(out)

    # regression check vs. pure-JAX reference (same semantics as the PyTorch module)
    ref = image[:, 1:] - image[:, :-1]
    assert out.shape == (N, T - 1, C, H, W)
    assert jnp.allclose(out, ref, atol=1e-6, rtol=1e-6)

    # extra regression: odd C*H*W exercises the lane-padding path
    img2 = jax.random.normal(jax.random.PRNGKey(1), (1, 4, 3, 9, 16), dtype=jnp.float32)
    out2 = jax.block_until_ready(rgb_diff(img2))
    assert jnp.allclose(out2, img2[:, 1:] - img2[:, :-1], atol=1e-6, rtol=1e-6)

    print("KERNEL_OK")
</pallas_src>

<mosaic_0001>
module attributes {stable_mosaic.version = 11 : i64} {
  func.func @_rgbdiff_kernel(%arg0: i32, %arg1: i32, %arg2: i32, %arg3: memref<1x7x8x128xf32, #tpu.memory_space<vmem>>, %arg4: memref<1x1x8x128xf32, #tpu.memory_space<vmem>>, %arg5: memref<1x7x8x128xf32, #tpu.memory_space<vmem>>, %arg6: memref<1x8x128xf32, #tpu.memory_space<vmem>>) attributes {dimension_semantics = [#tpu.dimension_semantics<parallel>, #tpu.dimension_semantics<parallel>, #tpu.dimension_semantics<arbitrary>], iteration_bounds = array<i64: 2, 1, 1>, scalar_prefetch = 0 : i64, scratch_operands = 1 : i64, tpu.core_type = #tpu.core_type<tc>, window_params = [{transform_indices = @transform_0, window_bounds = array<i64: 1, 7, 8, 128>}, {transform_indices = @transform_1, window_bounds = array<i64: 1, 1, 8, 128>}, {transform_indices = @transform_2, window_bounds = array<i64: 1, 7, 8, 128>}]} {
    %c0_i32 = arith.constant 0 : i32
    %0 = arith.cmpi eq, %arg2, %c0_i32 : i32
    %1 = arith.extui %0 : i1 to i32
    %c0_i32_0 = arith.constant 0 : i32
    %2 = arith.cmpi ne, %1, %c0_i32_0 : i32
    scf.if %2 {
      %c0_17 = arith.constant 0 : index
      %c0_18 = arith.constant 0 : index
      %c0_19 = arith.constant 0 : index
      %c0_20 = arith.constant 0 : index
      %16 = vector.load %arg4[%c0_17, %c0_18, %c0_19, %c0_20] : memref<1x1x8x128xf32, #tpu.memory_space<vmem>>, vector<1x1x8x128xf32>
      %17 = vector.shape_cast %16 : vector<1x1x8x128xf32> to vector<1x8x128xf32>
      %c0_21 = arith.constant 0 : index
      %c0_22 = arith.constant 0 : index
      %c0_23 = arith.constant 0 : index
      %18 = vector.load %arg6[%c0_21, %c0_22, %c0_23] : memref<1x8x128xf32, #tpu.memory_space<vmem>>, vector<1x8x128xf32>
      tpu.vector_store %arg6[%c0_21, %c0_22, %c0_23], %17 {strides = array<i32>} : memref<1x8x128xf32, #tpu.memory_space<vmem>>, vector<1x8x128xf32>,
    } else {
    }
    %c0 = arith.constant 0 : index
    %c0_1 = arith.constant 0 : index
    %c0_2 = arith.constant 0 : index
    %c0_3 = arith.constant 0 : index
    %3 = vector.load %arg3[%c0, %c0_1, %c0_2, %c0_3] : memref<1x7x8x128xf32, #tpu.memory_space<vmem>>, vector<1x7x8x128xf32>
    %4 = vector.extract_strided_slice %3 {offsets = [0, 1, 0, 0], sizes = [1, 6, 8, 128], strides = [1, 1, 1, 1]} : vector<1x7x8x128xf32> to vector<1x6x8x128xf32>
    %5 = vector.extract_strided_slice %3 {offsets = [0, 0, 0, 0], sizes = [1, 6, 8, 128], strides = [1, 1, 1, 1]} : vector<1x7x8x128xf32> to vector<1x6x8x128xf32>
    %6 = arith.subf %4, %5 : vector<1x6x8x128xf32>
    %c0_4 = arith.constant 0 : index
    %c0_5 = arith.constant 0 : index
    %c0_6 = arith.constant 0 : index
    %c0_7 = arith.constant 0 : index
    %7 = vector.load %arg5[%c0_4, %c0_5, %c0_6, %c0_7] : memref<1x7x8x128xf32, #tpu.memory_space<vmem>>, vector<1x6x8x128xf32>
    tpu.vector_store %arg5[%c0_4, %c0_5, %c0_6, %c0_7], %6 {strides = array<i32>} : memref<1x7x8x128xf32, #tpu.memory_space<vmem>>, vector<1x6x8x128xf32>,
    %c0_8 = arith.constant 0 : index
    %c0_9 = arith.constant 0 : index
    %c0_10 = arith.constant 0 : index
    %8 = vector.load %arg6[%c0_8, %c0_9, %c0_10] : memref<1x8x128xf32, #tpu.memory_space<vmem>>, vector<1x8x128xf32>
    %9 = vector.shape_cast %8 : vector<1x8x128xf32> to vector<1x1x8x128xf32>
    %10 = vector.extract_strided_slice %3 {offsets = [0, 6, 0, 0], sizes = [1, 1, 8, 128], strides = [1, 1, 1, 1]} : vector<1x7x8x128xf32> to vector<1x1x8x128xf32>
    %11 = arith.subf %9, %10 : vector<1x1x8x128xf32>
    %c0_11 = arith.constant 0 : index
    %c6 = arith.constant 6 : index
    %c0_12 = arith.constant 0 : index
    %c0_13 = arith.constant 0 : index
    %12 = vector.load %arg5[%c0_11, %c6, %c0_12, %c0_13] : memref<1x7x8x128xf32, #tpu.memory_space<vmem>>, vector<1x1x8x128xf32>
    tpu.vector_store %arg5[%c0_11, %c6, %c0_12, %c0_13], %11 {strides = array<i32>} : memref<1x7x8x128xf32, #tpu.memory_space<vmem>>, vector<1x1x8x128xf32>,
    %13 = vector.extract_strided_slice %3 {offsets = [0, 0, 0, 0], sizes = [1, 1, 8, 128], strides = [1, 1, 1, 1]} : vector<1x7x8x128xf32> to vector<1x1x8x128xf32>
    %14 = vector.shape_cast %13 : vector<1x1x8x128xf32> to vector<1x8x128xf32>
    %c0_14 = arith.constant 0 : index
    %c0_15 = arith.constant 0 : index
    %c0_16 = arith.constant 0 : index
    %15 = vector.load %arg6[%c0_14, %c0_15, %c0_16] : memref<1x8x128xf32, #tpu.memory_space<vmem>>, vector<1x8x128xf32>
    tpu.vector_store %arg6[%c0_14, %c0_15, %c0_16], %14 {strides = array<i32>} : memref<1x8x128xf32, #tpu.memory_space<vmem>>, vector<1x8x128xf32>,
    return
  }
  func.func @transform_0(%arg0: i32, %arg1: i32, %arg2: i32) -> (i32, i32, i32, i32) {
    %c0_i32 = arith.constant 0 : i32
    %0 = arith.subi %c0_i32, %arg2 : i32
    %c0_i32_0 = arith.constant 0 : i32
    %c0_i32_1 = arith.constant 0 : i32
    return %arg0, %0, %arg1, %c0_i32_0 : i32, i32, i32, i32
  }
  func.func @transform_1(%arg0: i32, %arg1: i32, %arg2: i32) -> (i32, i32, i32, i32) {
    %c7_i32 = arith.constant 7 : i32
    %c0_i32 = arith.constant 0 : i32
    %c0_i32_0 = arith.constant 0 : i32
    return %arg0, %c7_i32, %arg1, %c0_i32 : i32, i32, i32, i32
  }
  func.func @transform_2(%arg0: i32, %arg1: i32, %arg2: i32) -> (i32, i32, i32, i32) {
    %c0_i32 = arith.constant 0 : i32
    %0 = arith.subi %c0_i32, %arg2 : i32
    %c0_i32_0 = arith.constant 0 : i32
    %c0_i32_1 = arith.constant 0 : i32
    return %arg0, %0, %arg1, %c0_i32_0 : i32, i32, i32, i32
  }
}

</mosaic_0001>

<llo_original>
// kernel: tpu_custom_call.1
$region0: #{tpu_custom_call.1}
  #allocation0 [shape = 'u32[]', space=smem, size = 0x4, offset = 0x4, fixed_abs, tag = 'smem constant byte address 0x4 - core index']
  #allocation1 [shape = 'u32[144,128]{1,0:T(1,128)}', space=vmem, size = 0x12000, scoped, tag = 'internal scratch']
  #allocation2 [shape = 'f32[1,8,128]{2,1,0:T(8,128)}', space=vmem, size = 0x1000, scoped, tag = 'scratch operand']
  %s0 = inlined_call_operand.hbm [shape: f32[2,8,8,128], index: 0, kind: input, shape index: {}]
  %s1 = inlined_call_operand.hbm [shape: f32[2,8,8,128], index: 1, kind: input, shape index: {}]
  %s2 = inlined_call_operand.hbm [shape: f32[2,7,8,128], index: 2, kind: output, shape index: {}]
  %s3 = sld [smem:[#allocation0]]
  $region53: #{tpu_custom_call.1} parent=0
    _
  %s5 = ssub.s32 1, %s3
  %s6 = scalar_select 0, %s5, %s3
  $region1: #{tpu_custom_call.1} parent=0
    #allocation3 [shape = 'u8[57344]{0}', space=vmem, size = 0xe000, scoped, tag = 'input window, operand 0']
    #allocation4 [shape = 's32[2]{0}', space=sflag, size = 0x8, scoped, tag = 'scoped memory for tpu_custom_call.1']
    #allocation5 [shape = 's32[2]{0}', space=sflag, size = 0x8, scoped, tag = 'scoped memory for tpu_custom_call.1']
    #allocation6 [shape = 'u8[8192]{0}', space=vmem, size = 0x2000, scoped, tag = 'input window, operand 1']
    #allocation7 [shape = 's32[2]{0}', space=sflag, size = 0x8, scoped, tag = 'scoped memory for tpu_custom_call.1']
    #allocation8 [shape = 'u8[57344]{0}', space=vmem, size = 0xe000, scoped, tag = 'output window, operand 0']
    %7 = vsyncpa [#allocation4], 0
    %s8 = scalar_lea.sflag [#allocation4], 1
    %9 = vsyncpa %s8, 0
    %10 = vsyncpa [#allocation7], 0
    %s11 = scalar_lea.sflag [#allocation7], 1
    %12 = vsyncpa %s11, 0
    %13 = vsyncpa [#allocation5], 0
    %s14 = scalar_lea.sflag [#allocation5], 1
    %15 = vsyncpa %s14, 0
    loop: start=0, step=1, limit=4
    $region2: #{tpu_custom_call.1} parent=1 // loop_pre_header
      _
    $region3: #{tpu_custom_call.1} parent=1 // loop_header
      %s17 = sphi 0, %s21
      %p18 = scmp.ge.s32.totalorder %s17, 4
      %s24 = sphi 0, %s43
      %s25 = sphi 0, %s39
      %s26 = sphi 0, %s35
      %s27 = sphi 0, %s24
      %s28 = sphi 0, %s25
      %s29 = sphi 0, %s26
      %s30 = sphi 0, %s27
      %s31 = sphi 0, %s28
      %s32 = sphi 0, %s29
      %s52 = sphi 0, %s54
      %s55 = sphi 0, %s52
      %s56 = sphi 0, %s55
      %s72 = sphi 0, %s56
      %s80 = sphi 0, %s82
      %s83 = sphi 0, %s80
      %s84 = sphi 0, %s83
      %s100 = sphi 0, %s84
      %s112 = sphi 0, %s114
      %s115 = sphi 0, %s112
      %s116 = sphi 0, %s115
      %s132 = sphi 0, %s116
    $region4: #{tpu_custom_call.1} parent=1 // loop_header_branch
      %20 = sbr.rel (%p18) target = $region8
    $region5: #{tpu_custom_call.1} parent=1 // loop_body
      %s22 = ssub.s32 %s17, 1
      %s23 = ssub.s32 %s17, 2
      %s33 = sadd.s32 1, %s26
      %p34 = scmp.ge.s32.totalorder %s33, 1
      %s35 = scalar_select %p34, 0, %s33
      %s36 = sadd.s32 1, %s25
      %s37 = scalar_select %p34, %s36, %s25
      %p38 = scmp.ge.s32.totalorder %s37, 1
      %s39 = scalar_select %p38, 0, %s37
      %s40 = sadd.s32 1, %s24
      %s41 = scalar_select %p38, %s40, %s24
      %p42 = scmp.ge.s32.totalorder %s41, 2
      %s43 = scalar_select %p42, 0, %s41
      %s44 = ssub.s32 0, %s26
      %s45 = ssub.s32 0, %s35
      %s46 = ssub.s32 %s24, %s43
      %s47 = ssub.s32 %s44, %s45
      %s48 = sor.u32 %s46, %s47
      %s49 = ssub.s32 %s25, %s39
      %s50 = sor.u32 %s48, %s49
      %p51 = scmp.eq.s32.totalorder %s50, 0
      %s53 = sadd.s32 %s52, 1
      %s54 = scalar_select %p51, %s52, %s53
      %p57 = pneg %p51
      %p58 = scmp.eq.s32.totalorder %s17, 1
      %p59 = por %p57, %p58
      %p60 = scmp.ne.s32.totalorder %s52, %s55
      %p61 = scmp.eq.s32.totalorder %s17, 0
      %p62 = por %p60, %p61
      %p63 = scmp.ne.s32.totalorder %s52, %s55
      %p64 = scmp.eq.s32.totalorder %s22, 1
      %p65 = por %p63, %p64
      %p66 = scmp.ne.s32.totalorder %s55, %s56
      %p67 = scmp.eq.s32.totalorder %s22, 0
      %p68 = por %p66, %p67
      %p69 = scmp.ne.s32.totalorder %s55, %s56
      %p70 = scmp.eq.s32.totalorder %s23, 1
      %p71 = por %p69, %p70
      %p73 = scmp.ne.s32.totalorder %s56, %s72
      %p74 = scmp.eq.s32.totalorder %s23, 0
      %p75 = por %p73, %p74
      %s76 = ssub.s32 %s24, %s43
      %s77 = ssub.s32 %s25, %s39
      %s78 = sor.u32 %s76, %s77
      %p79 = scmp.eq.s32.totalorder %s78, 0
      %s81 = sadd.s32 %s80, 1
      %s82 = scalar_select %p79, %s80, %s81
      %p85 = pneg %p79
      %p86 = scmp.eq.s32.totalorder %s17, 1
      %p87 = por %p85, %p86
      %p88 = scmp.ne.s32.totalorder %s80, %s83
      %p89 = scmp.eq.s32.totalorder %s17, 0
      %p90 = por %p88, %p89
      %p91 = scmp.ne.s32.totalorder %s80, %s83
      %p92 = scmp.eq.s32.totalorder %s22, 1
      %p93 = por %p91, %p92
      %p94 = scmp.ne.s32.totalorder %s83, %s84
      %p95 = scmp.eq.s32.totalorder %s22, 0
      %p96 = por %p94, %p95
      %p97 = scmp.ne.s32.totalorder %s83, %s84
      %p98 = scmp.eq.s32.totalorder %s23, 1
      %p99 = por %p97, %p98
      %p101 = scmp.ne.s32.totalorder %s84, %s100
      %p102 = scmp.eq.s32.totalorder %s23, 0
      %p103 = por %p101, %p102
      %s104 = ssub.s32 0, %s26
      %s105 = ssub.s32 0, %s35
      %s106 = ssub.s32 %s24, %s43
      %s107 = ssub.s32 %s104, %s105
      %s108 = sor.u32 %s106, %s107
      %s109 = ssub.s32 %s25, %s39
      %s110 = sor.u32 %s108, %s109
      %p111 = scmp.eq.s32.totalorder %s110, 0
      %s113 = sadd.s32 %s112, 1
      %s114 = scalar_select %p111, %s112, %s113
      %p117 = pneg %p111
      %p118 = scmp.eq.s32.totalorder %s17, 1
      %p119 = por %p117, %p118
      %p120 = scmp.ne.s32.totalorder %s112, %s115
      %p121 = scmp.eq.s32.totalorder %s17, 0
      %p122 = por %p120, %p121
      %p123 = scmp.ne.s32.totalorder %s112, %s115
      %p124 = scmp.eq.s32.totalorder %s22, 1
      %p125 = por %p123, %p124
      %p126 = scmp.ne.s32.totalorder %s115, %s116
      %p127 = scmp.eq.s32.totalorder %s22, 0
      %p128 = por %p126, %p127
      %p129 = scmp.ne.s32.totalorder %s115, %s116
      %p130 = scmp.eq.s32.totalorder %s23, 1
      %p131 = por %p129, %p130
      %p133 = scmp.ne.s32.totalorder %s116, %s132
      %p134 = scmp.eq.s32.totalorder %s23, 0
      %p135 = por %p133, %p134
      %p136 = scmp.le.s32.totalorder 1, %s17
      %p137 = scmp.lt.s32.totalorder %s17, 3
      %p138 = pnand %p136, %p137
      %p139 = pneg %p138
      // Predicated region
      $region9: #{tpu_custom_call.1} parent=5 // pred_check
        _
      $region10: #{tpu_custom_call.1} parent=5 // pred_check_branch
        %141 = sbr.rel (%p138) target = $region12
      $region11: #{tpu_custom_call.1} parent=5 // pred_region
        %s142 = ssub.s32 %s17, 1
      $region12: #{tpu_custom_call.1} parent=5 // pred_fallthru
        _
      %p143 = scmp.lt.s32.totalorder %s17, 2
      // Predicated region
      $region13: #{tpu_custom_call.1} parent=5 // pred_check
        %p144 = pneg %p143
      $region14: #{tpu_custom_call.1} parent=5 // pred_check_branch
        %146 = sbr.rel (%p144) target = $region16
      $region15: #{tpu_custom_call.1} parent=5 // pred_region
        // Predicated region
        $region17: #{tpu_custom_call.1} parent=15 // pred_check
          %p147 = pneg %p62
        $region18: #{tpu_custom_call.1} parent=15 // pred_check_branch
          %149 = sbr.rel (%p147) target = $region20
        $region19: #{tpu_custom_call.1} parent=15 // pred_region
          %s150 = sand.u32 %s52, 1
          %s151 = scalar_lea.sflag [#allocation4], %s150
          %s152 = sand.u32 %s52, 1
          %s153 = smul.addr %s152, 56
          %s154 = scalar_lea.vmem [#allocation3], %s153
          %s155 = ssub.s32 0, %s26
          %s156 = smul.u32 7, %s155
          %s157 = ssub.s32 8, %s156
          %p158 = scmp.lt.s32.totalorder %s157, 7
          %s159 = scalar_select %p158, %s157, 7
          %s160 = smul.u32 128, %s159
          %s162 = ssub.s32 896, %s160
          %163 = vsyncadd %s151, %s162
          %p164 = scmp.ne.s32.totalorder 0, %s160
          %s165 = sadd.s32 %s25, %s156
          %s166 = smul.addr %s24, 8
          %s167 = sadd.s32 %s165, %s166
          %s168 = smul.addr %s167, 128
          %s169 = scalar_lea.hbm %s0, %s168
          %s170 = smul.u32 8, %s159
          %s171 = sshll.u32 %s154, 4
          %s172 = int_to_ptr.vmem [resolvable:$true] %s171
          %s173 = sshll.u32 %s170, 4
          %177 = dma.hbm_to_vmem [thread:$0]  (%p164), %s169, %s173, %s172, %s151, 128, 128, 8
        $region20: #{tpu_custom_call.1} parent=15 // pred_fallthru
          _
        // Predicated region
        $region21: #{tpu_custom_call.1} parent=15 // pred_check
          %p178 = pneg %p90
        $region22: #{tpu_custom_call.1} parent=15 // pred_check_branch
          %180 = sbr.rel (%p178) target = $region24
        $region23: #{tpu_custom_call.1} parent=15 // pred_region
          %s181 = sand.u32 %s80, 1
          %s182 = scalar_lea.sflag [#allocation7], %s181
          %s183 = sand.u32 %s80, 1
          %s184 = smul.addr %s183, 8
          %s185 = scalar_lea.vmem [#allocation6], %s184
          %s187 = ssub.s32 128, 128
          %188 = vsyncadd %s182, %s187
          %s189 = sadd.s32 %s25, 7
          %s190 = smul.addr %s24, 8
          %s191 = sadd.s32 %s189, %s190
          %s192 = smul.addr %s191, 128
          %s193 = scalar_lea.hbm %s1, %s192
          %s195 = sshll.u32 %s185, 4
          %s196 = int_to_ptr.vmem [resolvable:$true] %s195
          %198 = dma.hbm_to_vmem [thread:$0]  %s193, 128, %s196, %s182
        $region24: #{tpu_custom_call.1} parent=15 // pred_fallthru
          _
      $region16: #{tpu_custom_call.1} parent=5 // pred_fallthru
        _
      %p199 = scmp.le.s32.totalorder 1, %s17
      %p200 = scmp.lt.s32.totalorder %s17, 3
      %p201 = pnand %p199, %p200
      %p202 = pneg %p201
      // Predicated region
      $region25: #{tpu_custom_call.1} parent=5 // pred_check
        _
      $region26: #{tpu_custom_call.1} parent=5 // pred_check_branch
        %204 = sbr.rel (%p201) target = $region28
      $region27: #{tpu_custom_call.1} parent=5 // pred_region
        %s205 = ssub.s32 %s17, 1
        %s206 = sand.u32 %s55, 1
        %s207 = scalar_lea.sflag [#allocation4], %s206
        %s208 = sand.u32 %s55, 1
        %s209 = smul.addr %s208, 56
        %s210 = scalar_lea.vmem [#allocation3], %s209
        // Predicated region
        $region29: #{tpu_custom_call.1} parent=27 // pred_check
          %p211 = pneg %p68
        $region30: #{tpu_custom_call.1} parent=27 // pred_check_branch
          %213 = sbr.rel (%p211) target = $region32
        $region31: #{tpu_custom_call.1} parent=27 // pred_region
          %214 = dma.done %s207, 896
        $region32: #{tpu_custom_call.1} parent=27 // pred_fallthru
          _
        %s215 = sand.u32 %s83, 1
        %s216 = scalar_lea.sflag [#allocation7], %s215
        %s217 = sand.u32 %s83, 1
        %s218 = smul.addr %s217, 8
        %s219 = scalar_lea.vmem [#allocation6], %s218
        // Predicated region
        $region33: #{tpu_custom_call.1} parent=27 // pred_check
          %p220 = pneg %p96
        $region34: #{tpu_custom_call.1} parent=27 // pred_check_branch
          %222 = sbr.rel (%p220) target = $region36
        $region35: #{tpu_custom_call.1} parent=27 // pred_region
          %223 = dma.done %s216, 128
        $region36: #{tpu_custom_call.1} parent=27 // pred_fallthru
          _
        %s224 = sand.u32 %s55, 1
        %s225 = scalar_lea.sflag [#allocation4], %s224
        %s226 = sand.u32 %s55, 1
        %s227 = smul.addr %s226, 56
        %s228 = scalar_lea.vmem [#allocation3], %s227
        %p229 = pneg %p68
        %p230 = pneg %p65
        %s231 = sand.u32 %s83, 1
        %s232 = scalar_lea.sflag [#allocation7], %s231
        %s233 = sand.u32 %s83, 1
        %s234 = smul.addr %s233, 8
        %s235 = scalar_lea.vmem [#allocation6], %s234
        %p236 = pneg %p96
        %p237 = pneg %p93
        %p238 = pneg %p128
        %p239 = pneg %p125
        %s240 = sand.u32 %s115, 1
        %s241 = scalar_lea.sflag [#allocation5], %s240
        %s242 = sand.u32 %s115, 1
        %s243 = smul.addr %s242, 56
        %s244 = scalar_lea.vmem [#allocation8], %s243
        %s245 = ssub.s32 0, %s29
        %s246 = smul.u32 7, %s245
        %s247 = ssub.s32 8, %s246
        %p248 = scmp.lt.s32.totalorder %s247, 7
        %s249 = scalar_select %p248, %s247, 7
        %s250 = smul.u32 128, %s249
        %s251 = ssub.s32 0, %s29
        %s252 = smul.u32 7, %s251
        %p253 = scmp.eq.s32.totalorder %s29, 0
        // Predicated region
        $region37: #{tpu_custom_call.1} parent=27 // pred_check
          %p254 = pneg %p253
        $region38: #{tpu_custom_call.1} parent=27 // pred_check_branch
          %256 = sbr.rel (%p254) target = $region40
        $region39: #{tpu_custom_call.1} parent=27 // pred_region
          %v257 = vld [vmem:[%s219] sm:$0xff]
          %258 = vst [vmem:[#allocation2] sm:$0xff] %v257
        $region40: #{tpu_custom_call.1} parent=27 // pred_fallthru
          _
        %v259 = vld [vmem:[%s210] sm:$0xff]
        %v260 = vld [vmem:[%s210 + $0x8] sm:$0xff]
        %v261 = vld [vmem:[%s210 + $0x10] sm:$0xff]
        %v262 = vld [vmem:[%s210 + $0x18] sm:$0xff]
        %v263 = vld [vmem:[%s210 + $0x20] sm:$0xff]
        %v264 = vld [vmem:[%s210 + $0x28] sm:$0xff]
        %v265 = vld [vmem:[%s210 + $0x30] sm:$0xff]
        %v266 = vsub.f32 %v260, %v259
        %v267 = vsub.f32 %v261, %v260
        %v268 = vsub.f32 %v262, %v261
        %v269 = vsub.f32 %v263, %v262
        %v270 = vsub.f32 %v264, %v263
        %v271 = vsub.f32 %v265, %v264
        %272 = vst [vmem:[%s244] sm:$0xff] %v266
        %273 = vst [vmem:[%s244 + $0x8] sm:$0xff] %v267
        %274 = vst [vmem:[%s244 + $0x10] sm:$0xff] %v268
        %275 = vst [vmem:[%s244 + $0x18] sm:$0xff] %v269
        %276 = vst [vmem:[%s244 + $0x20] sm:$0xff] %v270
        %277 = vst [vmem:[%s244 + $0x28] sm:$0xff] %v271
        %v278 = vld [vmem:[#allocation2] sm:$0xff]
        %v279 = vsub.f32 %v278, %v265
        %s280 = scalar_lea.vmem %s244, 48 [#allocation8]
        %281 = vst [vmem:[%s280] sm:$0xff] %v279
        %282 = vst [vmem:[#allocation2] sm:$0xff] %v259
        %s283 = sand.u32 %s115, 1
        %s284 = scalar_lea.sflag [#allocation5], %s283
        %s285 = sand.u32 %s115, 1
        %s286 = smul.addr %s285, 56
        %s287 = scalar_lea.vmem [#allocation8], %s286
        // Predicated region
        $region41: #{tpu_custom_call.1} parent=27 // pred_check
          %p288 = pneg %p125
        $region42: #{tpu_custom_call.1} parent=27 // pred_check_branch
          %290 = sbr.rel (%p288) target = $region44
        $region43: #{tpu_custom_call.1} parent=27 // pred_region
          %s291 = ssub.s32 0, %s29
          %s292 = smul.u32 7, %s291
          %s294 = ssub.s32 896, 896
          %295 = vsyncadd %s284, %s294
          %s296 = sadd.s32 %s28, %s292
          %s297 = smul.addr %s27, 7
          %s298 = sadd.s32 %s296, %s297
          %s299 = smul.addr %s298, 128
          %s300 = scalar_lea.hbm %s2, %s299
          %s301 = sshll.u32 %s287, 4
          %s302 = int_to_ptr.vmem [resolvable:$true] %s301
          %307 = dma.vmem_to_hbm [thread:$0]  %s302, 896, %s300, %s284, 128, 128, 8
        $region44: #{tpu_custom_call.1} parent=27 // pred_fallthru
          _
      $region28: #{tpu_custom_call.1} parent=5 // pred_fallthru
        _
      %p308 = scmp.le.s32.totalorder 2, %s17
      // Predicated region
      $region45: #{tpu_custom_call.1} parent=5 // pred_check
        %p309 = pneg %p308
      $region46: #{tpu_custom_call.1} parent=5 // pred_check_branch
        %311 = sbr.rel (%p309) target = $region48
      $region47: #{tpu_custom_call.1} parent=5 // pred_region
        %s312 = ssub.s32 %s17, 2
        // Predicated region
        $region49: #{tpu_custom_call.1} parent=47 // pred_check
          %p313 = pneg %p131
        $region50: #{tpu_custom_call.1} parent=47 // pred_check_branch
          %315 = sbr.rel (%p313) target = $region52
        $region51: #{tpu_custom_call.1} parent=47 // pred_region
          %s316 = sand.u32 %s116, 1
          %s317 = scalar_lea.sflag [#allocation5], %s316
          %s318 = sand.u32 %s116, 1
          %s319 = smul.addr %s318, 56
          %s320 = scalar_lea.vmem [#allocation8], %s319
          %321 = dma.done %s317, 896
        $region52: #{tpu_custom_call.1} parent=47 // pred_fallthru
          _
      $region48: #{tpu_custom_call.1} parent=5 // pred_fallthru
        _
    $region6: #{tpu_custom_call.1} parent=1 // loop_footer
      %s21 = sadd.s32 1, %s17
    $region7: #{tpu_custom_call.1} parent=1 // loop_footer_branch
      %16 = sbr.rel target = $region3
    $region8: #{tpu_custom_call.1} parent=1 // loop_exit
      _
    %322 = vsyncpa [#allocation4], 1
    %s323 = scalar_lea.sflag [#allocation4], 1
    %324 = vsyncpa %s323, 1
    %325 = vsyncpa [#allocation7], 1
    %s326 = scalar_lea.sflag [#allocation7], 1
    %327 = vsyncpa %s326, 1
    %328 = vsyncpa [#allocation5], 1
    %s329 = scalar_lea.sflag [#allocation5], 1
    %330 = vsyncpa %s329, 1

</llo_original>
